<compile_context>
chip_gen: v5e
topology: v5e:2x2
jax: 0.10.0
libtpu: 0.0.40
codegen_flags: <defaults>
</compile_context>

<pallas_src>
import jax
import jax.numpy as jnp
from jax import lax
from jax.experimental import pallas as pl
from jax.experimental.pallas import tpu as pltpu

_OUT_ROWS = 32
_OUT_COLS = 2
_ROWS = 8      # one f32 vreg: (8 sublanes, 128 lanes)
_LANE = 128


def _ismodel_kernel(seed_ref, out_ref):
    """Fill one (8,128) vreg with uniform [0,1) floats via splitmix32 hashing."""
    seed = seed_ref[0]

    row = lax.broadcasted_iota(jnp.int32, (_ROWS, _LANE), 0)
    col = lax.broadcasted_iota(jnp.int32, (_ROWS, _LANE), 1)
    x = row * jnp.int32(_LANE) + col + seed

    # splitmix32 hash (int32 arithmetic wraps; bits match the uint32 version).
    x = x ^ lax.shift_right_logical(x, 16)
    x = x * jnp.int32(0x7FEB352D)
    x = x ^ lax.shift_right_logical(x, 15)
    x = x * jnp.int32(-2073287029)          # 0x846CA68B as two's-complement int32
    x = x ^ lax.shift_right_logical(x, 16)

    # Exponent trick: f = bitcast(0x3F800000 | top-23-bits) - 1.0  ->  [0, 1).
    mant = lax.shift_right_logical(x, 9) | jnp.int32(0x3F800000)
    out_ref[...] = lax.bitcast_convert_type(mant, jnp.float32) - jnp.float32(1.0)


def ismodel_forward(x, seed: int = 0):
    """Pallas equivalent of ISModel().forward(x): uniform (32, 2) logits.

    `x` is accepted for signature parity but — like the reference module — is
    never read, and is NOT passed to the pallas_call (no false dependency).
    Vary `seed` per call to match torch.rand's fresh-sample behavior.
    """
    del x  # ISModel.forward ignores its input.
    seed_arr = jnp.asarray([seed], dtype=jnp.int32)
    raw = pl.pallas_call(
        _ismodel_kernel,
        out_shape=jax.ShapeDtypeStruct((_ROWS, _LANE), jnp.float32),
        in_specs=[pl.BlockSpec(memory_space=pltpu.MemorySpace.SMEM)],
        out_specs=pl.BlockSpec(memory_space=pltpu.MemorySpace.VMEM),
    )(seed_arr)
    # Lane-dense (8,128) block in the kernel; take the first 64 uniforms here.
    return raw.reshape(-1)[: _OUT_ROWS * _OUT_COLS].reshape(_OUT_ROWS, _OUT_COLS)


if __name__ == "__main__":
    key = jax.random.PRNGKey(0)
    # Small NCHW input consistent with ISModel(in_channel=4); forward ignores it.
    x = jax.random.normal(key, (2, 4, 16, 16), dtype=jnp.float32)

    logit = ismodel_forward(x, seed=0)
    logit = jax.block_until_ready(logit)

    assert logit.shape == (_OUT_ROWS, _OUT_COLS), logit.shape
    assert logit.dtype == jnp.float32, logit.dtype
    assert bool(jnp.all(logit >= 0.0)) and bool(jnp.all(logit < 1.0)), "values not in [0,1)"

    print("KERNEL_OK")
</pallas_src>

<mosaic_0001>
module attributes {stable_mosaic.version = 11 : i64} {
  func.func @_ismodel_kernel(%arg0: memref<1xi32, #tpu.memory_space<smem>>, %arg1: memref<8x128xf32, #tpu.memory_space<vmem>>) attributes {dimension_semantics = [], scalar_prefetch = 0 : i64, scratch_operands = 0 : i64, tpu.core_type = #tpu.core_type<tc>} {
    %c0 = arith.constant 0 : index
    %0 = memref.load %arg0[%c0] : memref<1xi32, #tpu.memory_space<smem>>
    %1 = tpu.iota {dimensions = array<i32: 0>} : vector<8x128xi32>
    %2 = tpu.iota {dimensions = array<i32: 1>} : vector<8x128xi32>
    %c128_i32 = arith.constant 128 : i32
    %3 = vector.broadcast %c128_i32 : i32 to vector<8x128xi32>
    %4 = arith.muli %1, %3 : vector<8x128xi32>
    %5 = arith.addi %4, %2 : vector<8x128xi32>
    %6 = vector.broadcast %0 : i32 to vector<8x128xi32>
    %7 = arith.addi %5, %6 : vector<8x128xi32>
    %c16_i32 = arith.constant 16 : i32
    %8 = vector.broadcast %c16_i32 : i32 to vector<8x128xi32>
    %9 = arith.shrui %7, %8 : vector<8x128xi32>
    %10 = arith.xori %7, %9 : vector<8x128xi32>
    %c2146121005_i32 = arith.constant 2146121005 : i32
    %11 = vector.broadcast %c2146121005_i32 : i32 to vector<8x128xi32>
    %12 = arith.muli %10, %11 : vector<8x128xi32>
    %c15_i32 = arith.constant 15 : i32
    %13 = vector.broadcast %c15_i32 : i32 to vector<8x128xi32>
    %14 = arith.shrui %12, %13 : vector<8x128xi32>
    %15 = arith.xori %12, %14 : vector<8x128xi32>
    %c-2073287029_i32 = arith.constant -2073287029 : i32
    %16 = vector.broadcast %c-2073287029_i32 : i32 to vector<8x128xi32>
    %17 = arith.muli %15, %16 : vector<8x128xi32>
    %c16_i32_0 = arith.constant 16 : i32
    %18 = vector.broadcast %c16_i32_0 : i32 to vector<8x128xi32>
    %19 = arith.shrui %17, %18 : vector<8x128xi32>
    %20 = arith.xori %17, %19 : vector<8x128xi32>
    %c9_i32 = arith.constant 9 : i32
    %21 = vector.broadcast %c9_i32 : i32 to vector<8x128xi32>
    %22 = arith.shrui %20, %21 : vector<8x128xi32>
    %c1065353216_i32 = arith.constant 1065353216 : i32
    %23 = vector.broadcast %c1065353216_i32 : i32 to vector<8x128xi32>
    %24 = arith.ori %22, %23 : vector<8x128xi32>
    %25 = tpu.bitcast %24 : vector<8x128xi32> -> vector<8x128xf32>
    %cst = arith.constant 1.000000e+00 : f32
    %26 = vector.broadcast %cst : f32 to vector<8x128xf32>
    %27 = arith.subf %25, %26 : vector<8x128xf32>
    %c0_1 = arith.constant 0 : index
    %c0_2 = arith.constant 0 : index
    %28 = vector.load %arg1[%c0_1, %c0_2] : memref<8x128xf32, #tpu.memory_space<vmem>>, vector<8x128xf32>
    tpu.vector_store %arg1[%c0_1, %c0_2], %27 {strides = array<i32>} : memref<8x128xf32, #tpu.memory_space<vmem>>, vector<8x128xf32>,
    return
  }
}

</mosaic_0001>

<llo_original>
// kernel: tpu_custom_call.1
$region0: #{tpu_custom_call.1}
  #allocation0 [shape = 'u32[]', space=smem, size = 0x4, offset = 0x4, fixed_abs, tag = 'smem constant byte address 0x4 - core index']
  #allocation1 [shape = 'u32[72,128]{1,0:T(1,128)}', space=vmem, size = 0x9000, scoped, tag = 'internal scratch']
  #allocation2 [shape = 's32[1]{0:T(128)S(6)}', space=smem, size = 0x200, scoped, tag = 'scoped memory for tpu_custom_call.1']
  %s0 = inlined_call_operand.<no memory space> [shape: s32[1], index: 0, kind: input, shape index: {}]
  %s1 = inlined_call_operand.hbm [shape: f32[8,128], index: 1, kind: output, shape index: {}]
  %s2 = sld [smem:[#allocation0]]
  $region14: #{tpu_custom_call.1} parent=0
    _
  %s4 = ssub.s32 1, %s2
  %s5 = scalar_select 0, %s4, %s2
  %6 = sst [smem:[#allocation2]] %s0
  $region1: #{tpu_custom_call.1} parent=0
    #allocation3 [shape = 'u8[4096]{0}', space=vmem, size = 0x1000, scoped, tag = 'output window, operand 0, single buffered']
    #allocation4 [shape = 's32[1]{0}', space=sflag, size = 0x4, scoped, tag = 'scoped memory for tpu_custom_call.1']
    %7 = vsyncpa [#allocation4], 0
    // Predicated region
    $region2: #{tpu_custom_call.1} parent=1 // pred_check
      _
    $region3: #{tpu_custom_call.1} parent=1 // pred_check_branch
      %9 = sbr.rel (0) target = $region5
    $region4: #{tpu_custom_call.1} parent=1 // pred_region
      _
    $region5: #{tpu_custom_call.1} parent=1 // pred_fallthru
      _
    %s10 = sld [smem:[#allocation2]]
    %v11 = vlaneseq
    %v12 = vshrl.u32 %v11, 7
    %v13 = vlaneseq
    %v14 = vand.u32 %v13, 127
    %v15 = vmul.u32 %v12, 128
    %v16 = vadd.s32 %v15, %v14
    %v17 = vstv %s10
    %v18 = vadd.s32 %v16, %v17
    %v19 = vshrl.u32 %v18, 16
    %v20 = vxor.u32 %v18, %v19
    %v21 = vmul.u32 %v20, 2146121005
    %v22 = vshrl.u32 %v21, 15
    %v23 = vxor.u32 %v21, %v22
    %v24 = vmul.u32 %v23, 2221680267
    %v25 = vshrl.u32 %v24, 16
    %v26 = vxor.u32 %v24, %v25
    %v27 = vshrl.u32 %v26, 9
    %v28 = vor.u32 %v27, 1065353216
    %v30 = vsub.f32 %v28, 1.0
    %31 = vst [vmem:[#allocation3] sm:$0xff] %v30
    // Predicated region
    $region6: #{tpu_custom_call.1} parent=1 // pred_check
      _
    $region7: #{tpu_custom_call.1} parent=1 // pred_check_branch
      %33 = sbr.rel (0) target = $region9
    $region8: #{tpu_custom_call.1} parent=1 // pred_region
      %35 = vsyncadd [#allocation4], 0
      %s37 = sshll.u32 [#allocation3], 4
      %s38 = int_to_ptr.vmem [resolvable:$true] %s37
      %s39 = sshll.u32 %s1, 4
      %s40 = int_to_ptr.hbm [resolvable:$true] %s39
      %42 = dma.vmem_to_hbm [thread:$0]  %s38, 128, %s40, [#allocation4]
    $region9: #{tpu_custom_call.1} parent=1 // pred_fallthru
      _
    // Predicated region
    $region10: #{tpu_custom_call.1} parent=1 // pred_check
      _
    $region11: #{tpu_custom_call.1} parent=1 // pred_check_branch
      %44 = sbr.rel (0) target = $region13
    $region12: #{tpu_custom_call.1} parent=1 // pred_region
      %46 = dma.done [#allocation4], 128
    $region13: #{tpu_custom_call.1} parent=1 // pred_fallthru
      _
    %47 = vsyncpa [#allocation4], 1

</llo_original>
